<compile_context>
chip_gen: v5e
topology: v5e:2x2
jax: 0.10.0
libtpu: 0.0.40
codegen_flags: <defaults>
</compile_context>

<pallas_src>
import math
from functools import partial

import jax
import jax.numpy as jnp
from jax.experimental import pallas as pl
from jax.experimental.pallas import tpu as pltpu

LANES = 128


def _round_up(x: int, m: int) -> int:
    return ((x + m - 1) // m) * m


# ----------------------------- Pallas kernel ------------------------------ #

def _ema_update_kernel(omd_ref, shadow_ref, param_ref, out_ref):
    """out = shadow - one_minus_decay * (shadow - param)   (elementwise, f32)."""
    omd = omd_ref[0]                                   # scalar in SMEM
    s = shadow_ref[...]                                # f32
    p = param_ref[...].astype(jnp.float32)             # native dtype -> f32 in-kernel
    out_ref[...] = s - omd * (s - p)


# Whole update path (flatten/pad live params + pallas_call) under one jit.
# shadow_padded is donated so the aliased kernel output reuses its HBM buffer.
@partial(jax.jit, static_argnames=("block_rows",), donate_argnums=(0,))
def _ema_update_jit(shadow_padded, one_minus_decay, param_leaves, *, block_rows):
    rows, lanes = shadow_padded.shape
    p_flat = jnp.concatenate([jnp.ravel(p) for p in param_leaves])
    pad = rows * lanes - p_flat.shape[0]
    p_padded = jnp.pad(p_flat, (0, pad)).reshape(rows, lanes)
    omd = jnp.asarray(one_minus_decay, jnp.float32).reshape(1)

    return pl.pallas_call(
        _ema_update_kernel,
        out_shape=jax.ShapeDtypeStruct((rows, lanes), jnp.float32),
        grid=(rows // block_rows,),
        in_specs=[
            pl.BlockSpec(memory_space=pltpu.MemorySpace.SMEM),     # 1-minus-decay scalar
            pl.BlockSpec((block_rows, lanes), lambda i: (i, 0)),   # shadow tile (f32)
            pl.BlockSpec((block_rows, lanes), lambda i: (i, 0)),   # live-param tile (native dtype)
        ],
        out_specs=pl.BlockSpec((block_rows, lanes), lambda i: (i, 0)),
        # inputs are (omd, shadow, param); alias shadow -> output 0 (in-place EMA).
        input_output_aliases={1: 0},
        compiler_params=pltpu.CompilerParams(
            dimension_semantics=("parallel",)),       # megacore sharding on v7x
    )(omd, shadow_padded, p_padded)


# ------------------------------ LitEma (JAX) ------------------------------ #

class LitEmaJax:
    """JAX port of LitEma. Host-side bookkeeping (decay schedule, update_every
    gating) stays in Python exactly as in the PyTorch module; the per-element
    shadow update runs in the Pallas kernel above.

    The shadow is stored permanently as one flat zero-padded (rows, 128) f32
    buffer; per-parameter shadow tensors are reconstructed lazily only when
    requested (get_shadow / copy_to-style consumption)."""

    def __init__(self, params: dict, decay: float = 0.9995,
                 use_num_updates: bool = True, update_every: int = 100,
                 max_block_rows: int = 2048):
        if decay < 0.0 or decay > 1.0:
            raise ValueError('Decay must be between 0 and 1')
        if update_every:
            decay = math.pow(decay, update_every)
        self.decay = float(decay)
        self.update_every = update_every
        self.num_updates = 0 if use_num_updates else -1

        self._names = list(params.keys())
        self.m_name2s_name = {k: k.replace('.', '') for k in self._names}
        self._shapes = [tuple(params[k].shape) for k in self._names]
        self._sizes = [int(math.prod(s)) if len(s) else 1 for s in self._shapes]
        n = sum(self._sizes)

        # Tiling: big blocks (up to 2048 rows = 1 MiB/f32 buffer) to amortize the
        # per-grid-step pipeline overhead; rounded to 32 rows so sub-32-bit param
        # dtypes also tile cleanly. ~6 MiB double-buffered VMEM at the max, which
        # fits the 16 MiB scoped default on v5e without raising vmem_limit_bytes.
        rows_needed = -(-n // LANES)
        block_rows = min(max_block_rows, _round_up(max(rows_needed, 1), 32))
        rows = _round_up(rows_needed, block_rows)
        self._n = n
        self._rows = rows
        self._block_rows = block_rows

        # Persistent flat padded f32 shadow (built exactly once).
        s_flat = jnp.concatenate([jnp.ravel(params[k]).astype(jnp.float32)
                                  for k in self._names])
        self._shadow_flat = jnp.pad(
            s_flat, (0, rows * LANES - n)).reshape(rows, LANES)

    # Lazy per-parameter view of the shadow (only materialized when consumed).
    def get_shadow(self) -> dict:
        flat = self._shadow_flat.reshape(-1)[: self._n]
        out, off = {}, 0
        for k, shp, sz in zip(self._names, self._shapes, self._sizes):
            out[self.m_name2s_name[k]] = flat[off:off + sz].reshape(shp)
            off += sz
        return out

    def __call__(self, params: dict):
        decay = self.decay
        num_updates = self.num_updates
        if num_updates >= 0:
            num_updates += 1
            self.num_updates += 1
            decay = min(decay, (1 + num_updates) / (10 + num_updates))
        if self.update_every and num_updates % self.update_every != 0:
            return None  # skipped step (same early-return as the torch module)
        one_minus_decay = 1.0 - decay

        # One jitted dispatch: flatten+pad live params (native dtype) and run
        # the aliased, donated Pallas update. Decay is a traced scalar -> no
        # recompiles as the schedule changes.
        leaves = tuple(params[k] for k in self._names)
        self._shadow_flat = _ema_update_jit(
            self._shadow_flat,
            jnp.float32(one_minus_decay),
            leaves,
            block_rows=self._block_rows)
        return one_minus_decay  # returned for the reference check below


# --------------------------------- main ----------------------------------- #

if __name__ == "__main__":
    key = jax.random.PRNGKey(0)
    k1, k2, k3, k4, k5 = jax.random.split(key, 5)

    # Synthetic "model" parameters (deterministic init): a small conv + linear.
    # Conv weight uses PyTorch OIHW convention; EMA is elementwise so this is
    # just the stored layout.
    params = {
        "conv.weight":   jax.random.normal(k1, (4, 4, 3, 3), jnp.float32) * 0.1,
        "conv.bias":     jax.random.normal(k2, (4,),          jnp.float32) * 0.1,
        "linear.weight": jax.random.normal(k3, (32, 16),      jnp.float32) * 0.1,
        "linear.bias":   jax.random.normal(k4, (32,),         jnp.float32) * 0.1,
    }

    # update_every=1 so the very first forward actually performs the update
    # (with the default 100, the first 99 calls are early-returned, same as torch).
    ema = LitEmaJax(params, decay=0.9995, use_num_updates=True, update_every=1)

    # Simulated "current" model parameters after one optimizer step.
    new_params = {k: v + 0.01 * jax.random.normal(k5, v.shape, jnp.float32)
                  for k, v in params.items()}

    # Snapshot shadow BEFORE the update (materialized arrays, independent of the
    # donated flat buffer).
    shadow_before = {k: v for k, v in ema.get_shadow().items()}
    jax.block_until_ready(list(shadow_before.values()))

    omd = ema(new_params)                       # runs the Pallas kernel
    jax.block_until_ready(ema._shadow_flat)

    # Reference check (pure jnp) against the exact torch semantics.
    shadow_after = ema.get_shadow()
    ok = True
    for k in new_params:
        sname = ema.m_name2s_name[k]
        ref = shadow_before[sname] - omd * (shadow_before[sname] - new_params[k])
        ok &= bool(jnp.allclose(shadow_after[sname], ref, atol=1e-6, rtol=1e-6))

    if ok:
        print("KERNEL_OK")
    else:
        print("MISMATCH")
</pallas_src>

<mosaic_0001>
module attributes {stable_mosaic.version = 11 : i64} {
  func.func @_ema_update_kernel(%arg0: i32, %arg1: memref<1xf32, #tpu.memory_space<smem>>, %arg2: memref<32x128xf32, #tpu.memory_space<vmem>>, %arg3: memref<32x128xf32, #tpu.memory_space<vmem>>, %arg4: memref<32x128xf32, #tpu.memory_space<vmem>>) attributes {dimension_semantics = [#tpu.dimension_semantics<parallel>], iteration_bounds = array<i64: 1>, scalar_prefetch = 0 : i64, scratch_operands = 0 : i64, tpu.core_type = #tpu.core_type<tc>, window_params = [{transform_indices = @transform_0, window_bounds = array<i64: 1>}, {transform_indices = @transform_1, window_bounds = array<i64: 32, 128>}, {transform_indices = @transform_2, window_bounds = array<i64: 32, 128>}, {transform_indices = @transform_3, window_bounds = array<i64: 32, 128>}]} {
    %c0 = arith.constant 0 : index
    %0 = memref.load %arg1[%c0] : memref<1xf32, #tpu.memory_space<smem>>
    %c0_0 = arith.constant 0 : index
    %c0_1 = arith.constant 0 : index
    %1 = vector.load %arg2[%c0_0, %c0_1] : memref<32x128xf32, #tpu.memory_space<vmem>>, vector<32x128xf32>
    %c0_2 = arith.constant 0 : index
    %c0_3 = arith.constant 0 : index
    %2 = vector.load %arg3[%c0_2, %c0_3] : memref<32x128xf32, #tpu.memory_space<vmem>>, vector<32x128xf32>
    %3 = arith.subf %1, %2 : vector<32x128xf32>
    %4 = vector.broadcast %0 : f32 to vector<32x128xf32>
    %5 = arith.mulf %4, %3 : vector<32x128xf32>
    %6 = arith.subf %1, %5 : vector<32x128xf32>
    %c0_4 = arith.constant 0 : index
    %c0_5 = arith.constant 0 : index
    %7 = vector.load %arg4[%c0_4, %c0_5] : memref<32x128xf32, #tpu.memory_space<vmem>>, vector<32x128xf32>
    tpu.vector_store %arg4[%c0_4, %c0_5], %6 {strides = array<i32>} : memref<32x128xf32, #tpu.memory_space<vmem>>, vector<32x128xf32>,
    return
  }
  func.func @transform_0(%arg0: i32) -> i32 {
    %c0_i32 = arith.constant 0 : i32
    %c0_i32_0 = arith.constant 0 : i32
    return %c0_i32 : i32
  }
  func.func @transform_1(%arg0: i32) -> (i32, i32) {
    %c0_i32 = arith.constant 0 : i32
    %c0_i32_0 = arith.constant 0 : i32
    return %arg0, %c0_i32 : i32, i32
  }
  func.func @transform_2(%arg0: i32) -> (i32, i32) {
    %c0_i32 = arith.constant 0 : i32
    %c0_i32_0 = arith.constant 0 : i32
    return %arg0, %c0_i32 : i32, i32
  }
  func.func @transform_3(%arg0: i32) -> (i32, i32) {
    %c0_i32 = arith.constant 0 : i32
    %c0_i32_0 = arith.constant 0 : i32
    return %arg0, %c0_i32 : i32, i32
  }
}

</mosaic_0001>

<llo_original>
// kernel: _ema_update_jit.1
$region0: #{_ema_update_jit.1}
  #allocation0 [shape = 'u32[]', space=smem, size = 0x4, offset = 0x4, fixed_abs, tag = 'smem constant byte address 0x4 - core index']
  #allocation1 [shape = 'u32[72,128]{1,0:T(1,128)}', space=vmem, size = 0x9000, scoped, tag = 'internal scratch']
  #allocation2 [shape = 'f32[1]{0:T(128)S(6)}', space=smem, size = 0x200, scoped, tag = 'scoped memory for _ema_update_jit.1']
  %s0 = inlined_call_operand.<no memory space> [shape: f32[1], index: 0, kind: input, shape index: {}]
  %s1 = inlined_call_operand.hbm [shape: f32[32,128], index: 1, kind: input, shape index: {}, may-alias: {1,3}]
  %s2 = inlined_call_operand.vmem [shape: f32[32,128], index: 2, kind: input, shape index: {}]
  %s3 = inlined_call_operand.hbm [shape: f32[32,128], index: 3, kind: output, shape index: {}, may-alias: {1,3}]
  %s4 = sld [smem:[#allocation0]]
  $region26: #{_ema_update_jit.1} parent=0
    _
  %s6 = ssub.s32 1, %s4
  %s7 = scalar_select 0, %s6, %s4
  %8 = sst [smem:[#allocation2]] %s0
  $region1: #{_ema_update_jit.1} parent=0
    #allocation3 [shape = 'u8[16384]{0}', space=vmem, size = 0x4000, scoped, tag = 'input window, operand 1, single buffered']
    #allocation4 [shape = 's32[1]{0}', space=sflag, size = 0x4, scoped, tag = 'scoped memory for _ema_update_jit.1']
    #allocation5 [shape = 's32[1]{0}', space=sflag, size = 0x4, scoped, tag = 'scoped memory for _ema_update_jit.1']
    #allocation6 [shape = 'u8[16384]{0}', space=vmem, size = 0x4000, scoped, tag = 'output window, operand 0, single buffered']
    %9 = vsyncpa [#allocation4], 0
    %10 = vsyncpa [#allocation5], 0
    // Predicated region
    $region2: #{_ema_update_jit.1} parent=1 // pred_check
      _
    $region3: #{_ema_update_jit.1} parent=1 // pred_check_branch
      %12 = sbr.rel (0) target = $region5
    $region4: #{_ema_update_jit.1} parent=1 // pred_region
      _
    $region5: #{_ema_update_jit.1} parent=1 // pred_fallthru
      _
    // Predicated region
    $region6: #{_ema_update_jit.1} parent=1 // pred_check
      _
    $region7: #{_ema_update_jit.1} parent=1 // pred_check_branch
      %14 = sbr.rel (0) target = $region9
    $region8: #{_ema_update_jit.1} parent=1 // pred_region
      %16 = vsyncadd [#allocation4], 0
      %s17 = sshll.u32 %s1, 4
      %s18 = int_to_ptr.hbm [resolvable:$true] %s17
      %s19 = sshll.u32 [#allocation3], 4
      %s20 = int_to_ptr.vmem [resolvable:$true] %s19
      %25 = dma.hbm_to_vmem [thread:$0]  %s18, 512, %s20, [#allocation4], 128, 128, 8
    $region9: #{_ema_update_jit.1} parent=1 // pred_fallthru
      _
    // Predicated region
    $region10: #{_ema_update_jit.1} parent=1 // pred_check
      _
    $region11: #{_ema_update_jit.1} parent=1 // pred_check_branch
      %27 = sbr.rel (0) target = $region13
    $region12: #{_ema_update_jit.1} parent=1 // pred_region
      _
    $region13: #{_ema_update_jit.1} parent=1 // pred_fallthru
      _
    // Predicated region
    $region14: #{_ema_update_jit.1} parent=1 // pred_check
      _
    $region15: #{_ema_update_jit.1} parent=1 // pred_check_branch
      %29 = sbr.rel (0) target = $region17
    $region16: #{_ema_update_jit.1} parent=1 // pred_region
      %31 = dma.done [#allocation4], 512
    $region17: #{_ema_update_jit.1} parent=1 // pred_fallthru
      _
    %s32 = sld [smem:[#allocation2]]
    %v33 = vld [vmem:[#allocation3] sm:$0xff]
    %v34 = vld [vmem:[#allocation3 + $0x8] sm:$0xff]
    %v35 = vld [vmem:[#allocation3 + $0x10] sm:$0xff]
    %v36 = vld [vmem:[#allocation3 + $0x18] sm:$0xff]
    %v37 = vld [vmem:[%s2] sm:$0xff]
    %v38 = vld [vmem:[%s2 + $0x8] sm:$0xff]
    %v39 = vld [vmem:[%s2 + $0x10] sm:$0xff]
    %v40 = vld [vmem:[%s2 + $0x18] sm:$0xff]
    %v41 = vsub.f32 %v33, %v37
    %v42 = vsub.f32 %v34, %v38
    %v43 = vsub.f32 %v35, %v39
    %v44 = vsub.f32 %v36, %v40
    %v45 = vstv %s32
    %v46 = vmul.f32 %v45, %v41
    %v47 = vmul.f32 %v45, %v42
    %v48 = vmul.f32 %v45, %v43
    %v49 = vmul.f32 %v45, %v44
    %v50 = vsub.f32 %v33, %v46
    %v51 = vsub.f32 %v34, %v47
    %v52 = vsub.f32 %v35, %v48
    %v53 = vsub.f32 %v36, %v49
    %54 = vst [vmem:[#allocation6] sm:$0xff] %v50
    %55 = vst [vmem:[#allocation6 + $0x8] sm:$0xff] %v51
    %56 = vst [vmem:[#allocation6 + $0x10] sm:$0xff] %v52
    %57 = vst [vmem:[#allocation6 + $0x18] sm:$0xff] %v53
    // Predicated region
    $region18: #{_ema_update_jit.1} parent=1 // pred_check
      _
    $region19: #{_ema_update_jit.1} parent=1 // pred_check_branch
      %59 = sbr.rel (0) target = $region21
    $region20: #{_ema_update_jit.1} parent=1 // pred_region
      %61 = vsyncadd [#allocation5], 0
      %s62 = sshll.u32 [#allocation6], 4
      %s63 = int_to_ptr.vmem [resolvable:$true] %s62
      %s64 = sshll.u32 %s3, 4
      %s65 = int_to_ptr.hbm [resolvable:$true] %s64
      %70 = dma.vmem_to_hbm [thread:$0]  %s63, 512, %s65, [#allocation5], 128, 128, 8
    $region21: #{_ema_update_jit.1} parent=1 // pred_fallthru
      _
    // Predicated region
    $region22: #{_ema_update_jit.1} parent=1 // pred_check
      _
    $region23: #{_ema_update_jit.1} parent=1 // pred_check_branch
      %72 = sbr.rel (0) target = $region25
    $region24: #{_ema_update_jit.1} parent=1 // pred_region
      %74 = dma.done [#allocation5], 512
    $region25: #{_ema_update_jit.1} parent=1 // pred_fallthru
      _
    %75 = vsyncpa [#allocation4], 1
    %76 = vsyncpa [#allocation5], 1

</llo_original>
